<compile_context>
chip_gen: v7x
topology: tpu7x:2x2x1
jax: 0.10.0
libtpu: 0.0.40
codegen_flags: <defaults>
</compile_context>

<pallas_src>
import jax
import jax.numpy as jnp
from jax import lax
from jax.experimental import pallas as pl
from jax.experimental.pallas import tpu as pltpu


def _patch_embed_kernel(p_ref, w_ref, b_ref, o_ref):
    # p_ref: (1, TP, Kp)   w_ref: (E, Kp)   b_ref: (E, 1)   o_ref: (1, E, TP)
    patches = p_ref[0]                                   # (TP, Kp)
    # (E, Kp) x (TP, Kp)^T -> (E, TP); f32 accumulation on the MXU.
    y = lax.dot_general(
        w_ref[...], patches,
        dimension_numbers=(((1,), (1,)), ((), ())),
        preferred_element_type=jnp.float32)
    y = y + b_ref[...]                                   # (E, 1) bias broadcast over lanes
    o_ref[0] = y.astype(o_ref.dtype)


def _round_up(n, m):
    return ((n + m - 1) // m) * m


def patch_embed(x, weight, bias, patch_size, *, compute_dtype=jnp.bfloat16,
                tile_p=None):
    """x: (B, C, H, W) NCHW, weight: (E, C, ph, pw), bias: (E,).

    Returns (B, E, num_patches), exactly PyTorch PatchEmbed.forward
    (i.e. self.proj(x).flatten(2)). Matmul runs in `compute_dtype` with f32
    accumulation; pass compute_dtype=None to compute in the input dtype.
    """
    B, C, H, W = x.shape
    E = weight.shape[0]
    ph, pw = patch_size
    assert H % ph == 0 and W % pw == 0, "image size must be divisible by patch size"
    Hp, Wp = H // ph, W // pw
    P = Hp * Wp
    K = C * ph * pw

    cdt = x.dtype if compute_dtype is None else compute_dtype

    # Patch extraction: (B,C,Hp,ph,Wp,pw) -> (B,Hp,Wp,C,ph,pw) -> (B,P,K) so the
    # K ordering matches nn.Conv2d's (E, C, kh, kw) weight layout.
    patches = x.reshape(B, C, Hp, ph, Wp, pw)
    patches = jnp.transpose(patches, (0, 2, 4, 1, 3, 5)).reshape(B, P, K)
    patches = patches.astype(cdt)
    w_flat = weight.reshape(E, K).astype(cdt)            # (E, K): contract K (lanes)
    b_flat = bias.astype(jnp.float32).reshape(E, 1)      # f32 bias, broadcast over P

    # Lane-align the contraction dim (zero padding keeps the result exact).
    Kp = _round_up(K, 128)
    if Kp != K:
        patches = jnp.pad(patches, ((0, 0), (0, 0), (0, Kp - K)))
        w_flat = jnp.pad(w_flat, ((0, 0), (0, Kp - K)))

    # Patch tiling: prefer 512/256/128-wide tiles (lane-dense output stores,
    # full MXU cadence); fall back to full P for small / unaligned P, or pad P
    # for large unaligned P so VMEM stays bounded.
    if tile_p is None:
        tile_p = next((t for t in (512, 256, 128) if P % t == 0), None)
        if tile_p is None:
            tile_p = P if P <= 1024 else 256
    P_pad = _round_up(P, tile_p)
    if P_pad != P:
        patches = jnp.pad(patches, ((0, 0), (0, P_pad - P), (0, 0)))
    assert P_pad % tile_p == 0

    grid = (B, P_pad // tile_p)

    out = pl.pallas_call(
        _patch_embed_kernel,
        out_shape=jax.ShapeDtypeStruct((B, E, P_pad), x.dtype),
        grid_spec=pltpu.PrefetchScalarGridSpec(
            num_scalar_prefetch=0,
            grid=grid,
            in_specs=[
                pl.BlockSpec((1, tile_p, Kp), lambda b, p: (b, p, 0)),
                pl.BlockSpec((E, Kp), lambda b, p: (0, 0)),
                pl.BlockSpec((E, 1), lambda b, p: (0, 0)),
            ],
            out_specs=pl.BlockSpec((1, E, tile_p), lambda b, p: (b, 0, p)),
        ),
        compiler_params=pltpu.CompilerParams(
            dimension_semantics=("parallel", "parallel"),
            allow_input_fusion=[True, True, True],
        ),
    )(patches, w_flat, b_flat)                           # (B, E, P_pad)

    if P_pad != P:
        out = out[:, :, :P]
    return out


if __name__ == "__main__":
    # Small shapes consistent with the module.
    B, C = 2, 4
    img_size = (16, 16)
    patch_size = (4, 4)
    embed_dim = 32

    key = jax.random.PRNGKey(0)
    kx, kw, kb = jax.random.split(key, 3)

    x = jax.random.normal(kx, (B, C, *img_size), dtype=jnp.float32)
    # Conv2d weight shape: (embed_dim, in_chans, ph, pw), bias: (embed_dim,)
    weight = jax.random.normal(
        kw, (embed_dim, C, patch_size[0], patch_size[1]), dtype=jnp.float32) * 0.02
    bias = jax.random.normal(kb, (embed_dim,), dtype=jnp.float32) * 0.02

    Hp, Wp = img_size[0] // patch_size[0], img_size[1] // patch_size[1]
    P = Hp * Wp

    # Plain-JAX reference (== PyTorch conv with kernel=stride=patch, flatten(2)).
    ref_patches = x.reshape(B, C, Hp, patch_size[0], Wp, patch_size[1])
    ref_patches = jnp.transpose(ref_patches, (0, 2, 4, 1, 3, 5)).reshape(B, P, -1)
    ref = jnp.einsum("bpk,ek->bep", ref_patches,
                     weight.reshape(embed_dim, -1)) + bias[None, :, None]

    # Pure-f32 compute path: tight check of kernel semantics.
    y32 = jax.block_until_ready(
        patch_embed(x, weight, bias, patch_size, compute_dtype=None))
    assert y32.shape == (B, embed_dim, P), y32.shape
    assert jnp.allclose(y32, ref, atol=1e-4, rtol=1e-4)

    # Default bf16-compute path (f32 accumulation): bandwidth/MXU-optimized.
    y = jax.block_until_ready(patch_embed(x, weight, bias, patch_size))
    assert y.shape == (B, embed_dim, P), y.shape
    assert jnp.allclose(y, ref, atol=2e-2, rtol=2e-2)

    print("KERNEL_OK")
</pallas_src>

<mosaic_0001>
module attributes {stable_mosaic.version = 11 : i64} {
  func.func @_patch_embed_kernel(%arg0: i32, %arg1: i32, %arg2: memref<1x16x128xf32, #tpu.memory_space<vmem>>, %arg3: memref<32x128xf32, #tpu.memory_space<vmem>>, %arg4: memref<32x1xf32, #tpu.memory_space<vmem>>, %arg5: memref<1x32x16xf32, #tpu.memory_space<vmem>>) attributes {dimension_semantics = [#tpu.dimension_semantics<parallel>, #tpu.dimension_semantics<parallel>], iteration_bounds = array<i64: 2, 1>, scalar_prefetch = 0 : i64, scratch_operands = 0 : i64, tpu.core_type = #tpu.core_type<tc>, window_params = [{transform_indices = @transform_0, window_bounds = array<i64: 1, 16, 128>}, {pipeline_mode = #tpu.pipeline_mode<synchronous>, transform_indices = @transform_1, window_bounds = array<i64: 32, 128>}, {pipeline_mode = #tpu.pipeline_mode<synchronous>, transform_indices = @transform_2, window_bounds = array<i64: 32, 1>}, {transform_indices = @transform_3, window_bounds = array<i64: 1, 32, 16>}]} {
    %c0 = arith.constant 0 : index
    %c0_0 = arith.constant 0 : index
    %c0_1 = arith.constant 0 : index
    %0 = vector.load %arg2[%c0, %c0_0, %c0_1] : memref<1x16x128xf32, #tpu.memory_space<vmem>>, vector<1x16x128xf32>
    %1 = vector.shape_cast %0 : vector<1x16x128xf32> to vector<16x128xf32>
    %c0_2 = arith.constant 0 : index
    %c0_3 = arith.constant 0 : index
    %2 = vector.load %arg3[%c0_2, %c0_3] : memref<32x128xf32, #tpu.memory_space<vmem>>, vector<32x128xf32>
    %cst = arith.constant dense<0.000000e+00> : vector<32x16xf32>
    %3 = tpu.matmul %2, %1, %cst {dimension_numbers = #tpu.dot_dimension_numbers<[1], [1], [0], [0], [0, 0, 1, 0], [], []>} : vector<32x128xf32>, vector<16x128xf32>, vector<32x16xf32> -> vector<32x16xf32>
    %c0_4 = arith.constant 0 : index
    %c0_5 = arith.constant 0 : index
    %4 = vector.load %arg4[%c0_4, %c0_5] : memref<32x1xf32, #tpu.memory_space<vmem>>, vector<32x1xf32>
    %5 = vector.broadcast %4 : vector<32x1xf32> to vector<32x16xf32>
    %6 = arith.addf %3, %5 : vector<32x16xf32>
    %c0_6 = arith.constant 0 : index
    %c0_7 = arith.constant 0 : index
    %c0_8 = arith.constant 0 : index
    %7 = vector.load %arg5[%c0_6, %c0_7, %c0_8] : memref<1x32x16xf32, #tpu.memory_space<vmem>>, vector<1x32x16xf32>
    %8 = vector.shape_cast %7 : vector<1x32x16xf32> to vector<32x16xf32>
    %9 = vector.shape_cast %6 : vector<32x16xf32> to vector<1x32x16xf32>
    tpu.vector_store %arg5[%c0_6, %c0_7, %c0_8], %9 {strides = array<i32>} : memref<1x32x16xf32, #tpu.memory_space<vmem>>, vector<1x32x16xf32>,
    return
  }
  func.func @transform_0(%arg0: i32, %arg1: i32) -> (i32, i32, i32) {
    %c0_i32 = arith.constant 0 : i32
    %c0_i32_0 = arith.constant 0 : i32
    return %arg0, %arg1, %c0_i32 : i32, i32, i32
  }
  func.func @transform_1(%arg0: i32, %arg1: i32) -> (i32, i32) {
    %c0_i32 = arith.constant 0 : i32
    %c0_i32_0 = arith.constant 0 : i32
    %c0_i32_1 = arith.constant 0 : i32
    return %c0_i32, %c0_i32_0 : i32, i32
  }
  func.func @transform_2(%arg0: i32, %arg1: i32) -> (i32, i32) {
    %c0_i32 = arith.constant 0 : i32
    %c0_i32_0 = arith.constant 0 : i32
    %c0_i32_1 = arith.constant 0 : i32
    return %c0_i32, %c0_i32_0 : i32, i32
  }
  func.func @transform_3(%arg0: i32, %arg1: i32) -> (i32, i32, i32) {
    %c0_i32 = arith.constant 0 : i32
    %c0_i32_0 = arith.constant 0 : i32
    return %arg0, %c0_i32, %arg1 : i32, i32, i32
  }
}

</mosaic_0001>

<llo_original>
// kernel: tpu_custom_call.1
$region0: #{tpu_custom_call.1}
  #allocation0 [shape = 'u32[]', space=smem, size = 0x4, offset = 0x4, fixed_abs, tag = 'smem constant byte address 0x4 - core index']
  #allocation1 [shape = 'u32[144,128]{1,0:T(1,128)}', space=vmem, size = 0x12000, scoped, tag = 'internal scratch']
  %s0 = inlined_call_operand.vmem [shape: f32[2,16,128], index: 0, kind: input, shape index: {}]
  %s1 = inlined_call_operand.hbm [shape: f32[32,128], index: 1, kind: input, shape index: {}]
  %s2 = inlined_call_operand.vmem [shape: f32[32,1], index: 2, kind: input, shape index: {}]
  %s3 = inlined_call_operand.vmem [shape: f32[2,32,16], index: 3, kind: output, shape index: {}]
  %s4 = sld [smem:[#allocation0]]
  $region49: #{tpu_custom_call.1} parent=0
    _
  %s6 = ssub.s32 1, %s4
  %s7 = scalar_select 0, %s6, %s4
  $region1: #{tpu_custom_call.1} parent=0
    #allocation2 [shape = 'u8[16384]{0}', space=vmem, size = 0x4000, scoped, tag = 'input window, operand 1, single buffered']
    #allocation3 [shape = 's32[2]{0}', space=sflag, size = 0x8, scoped, tag = 'scoped memory for tpu_custom_call.1']
    %8 = vsyncpa [#allocation3], 0
    loop: start=0, step=1, limit=4
    $region2: #{tpu_custom_call.1} parent=1 // loop_pre_header
      _
    $region3: #{tpu_custom_call.1} parent=1 // loop_header
      %s10 = sphi 0, %s14
      %p11 = scmp.ge.s32.totalorder %s10, 4
      %s17 = sphi 0, %s29
      %s18 = sphi 0, %s25
      %s19 = sphi 0, %s17
      %s20 = sphi 0, %s18
      %s21 = sphi 0, %s19
      %s22 = sphi 0, %s20
      %s34 = sphi 0, %s36
      %s37 = sphi 0, %s34
      %s38 = sphi 0, %s37
      %s54 = sphi 0, %s38
      %s58 = sphi 0, %s58
      %s60 = sphi 0, %s58
      %s61 = sphi 0, %s60
      %s75 = sphi 0, %s61
      %s79 = sphi 0, %s79
      %s81 = sphi 0, %s79
      %s82 = sphi 0, %s81
      %s96 = sphi 0, %s82
      %s104 = sphi 0, %s106
      %s107 = sphi 0, %s104
      %s108 = sphi 0, %s107
      %s124 = sphi 0, %s108
    $region4: #{tpu_custom_call.1} parent=1 // loop_header_branch
      %13 = sbr.rel (%p11) target = $region8
    $region5: #{tpu_custom_call.1} parent=1 // loop_body
      %s15 = ssub.s32 %s10, 1
      %s16 = ssub.s32 %s10, 2
      %s23 = sadd.s32 1, %s18
      %p24 = scmp.ge.s32.totalorder %s23, 1
      %s25 = scalar_select %p24, 0, %s23
      %s26 = sadd.s32 1, %s17
      %s27 = scalar_select %p24, %s26, %s17
      %p28 = scmp.ge.s32.totalorder %s27, 2
      %s29 = scalar_select %p28, 0, %s27
      %s30 = ssub.s32 %s17, %s29
      %s31 = ssub.s32 %s18, %s25
      %s32 = sor.u32 %s30, %s31
      %p33 = scmp.eq.s32.totalorder %s32, 0
      %s35 = sadd.s32 %s34, 1
      %s36 = scalar_select %p33, %s34, %s35
      %p39 = pneg %p33
      %p40 = scmp.eq.s32.totalorder %s10, 1
      %p41 = por %p39, %p40
      %p42 = scmp.ne.s32.totalorder %s34, %s37
      %p43 = scmp.eq.s32.totalorder %s10, 0
      %p44 = por %p42, %p43
      %p45 = scmp.ne.s32.totalorder %s34, %s37
      %p46 = scmp.eq.s32.totalorder %s15, 1
      %p47 = por %p45, %p46
      %p48 = scmp.ne.s32.totalorder %s37, %s38
      %p49 = scmp.eq.s32.totalorder %s15, 0
      %p50 = por %p48, %p49
      %p51 = scmp.ne.s32.totalorder %s37, %s38
      %p52 = scmp.eq.s32.totalorder %s16, 1
      %p53 = por %p51, %p52
      %p55 = scmp.ne.s32.totalorder %s38, %s54
      %p56 = scmp.eq.s32.totalorder %s16, 0
      %p57 = por %p55, %p56
      %s59 = sadd.s32 %s58, 1
      %p62 = scmp.eq.s32.totalorder %s10, 1
      %p63 = scmp.ne.s32.totalorder %s58, %s60
      %p64 = scmp.eq.s32.totalorder %s10, 0
      %p65 = por %p63, %p64
      %p66 = scmp.ne.s32.totalorder %s58, %s60
      %p67 = scmp.eq.s32.totalorder %s15, 1
      %p68 = por %p66, %p67
      %p69 = scmp.ne.s32.totalorder %s60, %s61
      %p70 = scmp.eq.s32.totalorder %s15, 0
      %p71 = por %p69, %p70
      %p72 = scmp.ne.s32.totalorder %s60, %s61
      %p73 = scmp.eq.s32.totalorder %s16, 1
      %p74 = por %p72, %p73
      %p76 = scmp.ne.s32.totalorder %s61, %s75
      %p77 = scmp.eq.s32.totalorder %s16, 0
      %p78 = por %p76, %p77
      %s80 = sadd.s32 %s79, 1
      %p83 = scmp.eq.s32.totalorder %s10, 1
      %p84 = scmp.ne.s32.totalorder %s79, %s81
      %p85 = scmp.eq.s32.totalorder %s10, 0
      %p86 = por %p84, %p85
      %p87 = scmp.ne.s32.totalorder %s79, %s81
      %p88 = scmp.eq.s32.totalorder %s15, 1
      %p89 = por %p87, %p88
      %p90 = scmp.ne.s32.totalorder %s81, %s82
      %p91 = scmp.eq.s32.totalorder %s15, 0
      %p92 = por %p90, %p91
      %p93 = scmp.ne.s32.totalorder %s81, %s82
      %p94 = scmp.eq.s32.totalorder %s16, 1
      %p95 = por %p93, %p94
      %p97 = scmp.ne.s32.totalorder %s82, %s96
      %p98 = scmp.eq.s32.totalorder %s16, 0
      %p99 = por %p97, %p98
      %s100 = ssub.s32 %s17, %s29
      %s101 = ssub.s32 %s18, %s25
      %s102 = sor.u32 %s100, %s101
      %p103 = scmp.eq.s32.totalorder %s102, 0
      %s105 = sadd.s32 %s104, 1
      %s106 = scalar_select %p103, %s104, %s105
      %p109 = pneg %p103
      %p110 = scmp.eq.s32.totalorder %s10, 1
      %p111 = por %p109, %p110
      %p112 = scmp.ne.s32.totalorder %s104, %s107
      %p113 = scmp.eq.s32.totalorder %s10, 0
      %p114 = por %p112, %p113
      %p115 = scmp.ne.s32.totalorder %s104, %s107
      %p116 = scmp.eq.s32.totalorder %s15, 1
      %p117 = por %p115, %p116
      %p118 = scmp.ne.s32.totalorder %s107, %s108
      %p119 = scmp.eq.s32.totalorder %s15, 0
      %p120 = por %p118, %p119
      %p121 = scmp.ne.s32.totalorder %s107, %s108
      %p122 = scmp.eq.s32.totalorder %s16, 1
      %p123 = por %p121, %p122
      %p125 = scmp.ne.s32.totalorder %s108, %s124
      %p126 = scmp.eq.s32.totalorder %s16, 0
      %p127 = por %p125, %p126
      %p128 = scmp.le.s32.totalorder 1, %s10
      %p129 = scmp.lt.s32.totalorder %s10, 3
      %p130 = pnand %p128, %p129
      %p131 = pneg %p130
      // Predicated region
      $region9: #{tpu_custom_call.1} parent=5 // pred_check
        _
      $region10: #{tpu_custom_call.1} parent=5 // pred_check_branch
        %133 = sbr.rel (%p130) target = $region12
      $region11: #{tpu_custom_call.1} parent=5 // pred_region
        %s134 = ssub.s32 %s10, 1
        // Predicated region
        $region13: #{tpu_custom_call.1} parent=11 // pred_check
          %p135 = pneg %p71
        $region14: #{tpu_custom_call.1} parent=11 // pred_check_branch
          %137 = sbr.rel (%p135) target = $region16
        $region15: #{tpu_custom_call.1} parent=11 // pred_region
          %s139 = ssub.s32 512, 512
          %140 = vsyncadd [#allocation3], %s139
          %s141 = sshll.u32 [#allocation2], 4
          %s142 = int_to_ptr.vmem [resolvable:$true] %s141
          %147 = dma.hbm_to_vmem [thread:$0]  %s1, 512, %s142, [#allocation3], 128, 128, 8
        $region16: #{tpu_custom_call.1} parent=11 // pred_fallthru
          _
        // Predicated region
        $region17: #{tpu_custom_call.1} parent=11 // pred_check
          %p148 = pneg %p92
        $region18: #{tpu_custom_call.1} parent=11 // pred_check_branch
          %150 = sbr.rel (%p148) target = $region20
        $region19: #{tpu_custom_call.1} parent=11 // pred_region
          _
        $region20: #{tpu_custom_call.1} parent=11 // pred_fallthru
          _
      $region12: #{tpu_custom_call.1} parent=5 // pred_fallthru
        _
      %p151 = scmp.lt.s32.totalorder %s10, 2
      // Predicated region
      $region21: #{tpu_custom_call.1} parent=5 // pred_check
        %p152 = pneg %p151
      $region22: #{tpu_custom_call.1} parent=5 // pred_check_branch
        %154 = sbr.rel (%p152) target = $region24
      $region23: #{tpu_custom_call.1} parent=5 // pred_region
        // Predicated region
        $region25: #{tpu_custom_call.1} parent=23 // pred_check
          %p155 = pneg %p44
        $region26: #{tpu_custom_call.1} parent=23 // pred_check_branch
          %157 = sbr.rel (%p155) target = $region28
        $region27: #{tpu_custom_call.1} parent=23 // pred_region
          %s158 = smul.u32 2, %s18
          %p159 = scmp.lt.s32.totalorder %s17, 1
          %s160 = scalar_select %p159, %s17, 1
          %p161 = scmp.lt.s32.totalorder %s158, 1
          %s162 = scalar_select %p161, %s158, 1
          %s163 = smul.addr %s160, 2
          %s164 = sadd.s32 %s162, %s163
          %s165 = smul.addr %s164, 8
          %s166 = scalar_lea.vmem %s0, %s165
          %s167 = smul.u32 2, %s18
        $region28: #{tpu_custom_call.1} parent=23 // pred_fallthru
          _
      $region24: #{tpu_custom_call.1} parent=5 // pred_fallthru
        _
      %p168 = scmp.le.s32.totalorder 1, %s10
      %p169 = scmp.lt.s32.totalorder %s10, 3
      %p170 = pnand %p168, %p169
      %p171 = pneg %p170
      // Predicated region
      $region29: #{tpu_custom_call.1} parent=5 // pred_check
        _
      $region30: #{tpu_custom_call.1} parent=5 // pred_check_branch
        %173 = sbr.rel (%p170) target = $region32
      $region31: #{tpu_custom_call.1} parent=5 // pred_region
        %s174 = ssub.s32 %s10, 1
        // Predicated region
        $region33: #{tpu_custom_call.1} parent=31 // pred_check
          %p175 = pneg %p71
        $region34: #{tpu_custom_call.1} parent=31 // pred_check_branch
          %177 = sbr.rel (%p175) target = $region36
        $region35: #{tpu_custom_call.1} parent=31 // pred_region
          %178 = dma.done [#allocation3], 512
        $region36: #{tpu_custom_call.1} parent=31 // pred_fallthru
          _
        %s179 = smul.u32 2, %s20
        %p180 = scmp.lt.s32.totalorder %s19, 1
        %s181 = scalar_select %p180, %s19, 1
        %p182 = scmp.lt.s32.totalorder %s179, 1
        %s183 = scalar_select %p182, %s179, 1
        %s184 = smul.addr %s181, 2
        %s185 = sadd.s32 %s183, %s184
        %s186 = smul.addr %s185, 8
        %s187 = scalar_lea.vmem %s0, %s186
        %p188 = pneg %p50
        %p189 = pneg %p47
        %p190 = pneg %p71
        %p191 = pneg %p68
        %p192 = pneg %p92
        %p193 = pneg %p89
        %p194 = pneg %p120
        %p195 = pneg %p117
        %p196 = scmp.lt.s32.totalorder %s19, 1
        %s197 = scalar_select %p196, %s19, 1
        %p198 = scmp.lt.s32.totalorder %s20, 0
        %s199 = scalar_select %p198, %s20, 0
        %s200 = smul.addr %s197, 4
        %s201 = sadd.s32 %s199, %s200
        %s202 = smul.addr %s201, 8
        %s203 = scalar_lea.vmem %s3, %s202
        %s204 = smul.u32 2, %s20
        %p205 = scmp.lt.s32.totalorder %s19, 1
        %s206 = scalar_select %p205, %s19, 1
        %p207 = scmp.lt.s32.totalorder %s204, 1
        %s208 = scalar_select %p207, %s204, 1
        %s209 = smul.addr %s206, 2
        %s210 = sadd.s32 %s208, %s209
        %s211 = smul.addr %s210, 8
        %s212 = scalar_lea.vmem %s0, %s211
        %s213 = smul.u32 2, %s20
        %p214 = scmp.lt.s32.totalorder %s19, 1
        %s215 = scalar_select %p214, %s19, 1
        %p216 = scmp.lt.s32.totalorder %s20, 0
        %s217 = scalar_select %p216, %s20, 0
        %s218 = smul.addr %s215, 4
        %s219 = sadd.s32 %s217, %s218
        %s220 = smul.addr %s219, 8
        %s221 = scalar_lea.vmem %s3, %s220
        %v222 = vld [vmem:[%s212] sm:$0xff]
        %v223 = vld [vmem:[%s212 + $0x8] sm:$0xff]
        %v224 = vld [vmem:[#allocation2] sm:$0xff]
        %v225 = vld [vmem:[#allocation2 + $0x8] sm:$0xff]
        %v226 = vld [vmem:[#allocation2 + $0x10] sm:$0xff]
        %v227 = vld [vmem:[#allocation2 + $0x18] sm:$0xff]
        %v228 = vld [vmem:[%s2] sm:$0xff]
        %v229 = vld [vmem:[%s2 + $0x8] sm:$0xff]
        %v230 = vld [vmem:[%s2 + $0x10] sm:$0xff]
        %v231 = vld [vmem:[%s2 + $0x18] sm:$0xff]
        %233 = vset.pattern.permute.xlu0 0
        %234 = vperm.xlu0 %233, %v228
        %v235 = vpop.permute.xlu0 %234
        %238 = vset.pattern.permute.xlu0 0
        %239 = vperm.xlu0 %238, %v229
        %v240 = vpop.permute.xlu0 %239
        %243 = vset.pattern.permute.xlu0 0
        %244 = vperm.xlu0 %243, %v230
        %v245 = vpop.permute.xlu0 %244
        %248 = vset.pattern.permute.xlu0 0
        %249 = vperm.xlu0 %248, %v231
        %v250 = vpop.permute.xlu0 %249
        %252 = vmatprep.subr.mxu0 0.0
        %253 = vmatpush1.xpose.msra.mxu0 %v222
        %254 = vmatprep.subr.mxu0 0.0
        %255 = vmatpush1.xpose.msra.mxu0 %v223
        %256 = vmatprep.subr.mxu0 0.0
        %257 = vmatpush1.xpose.msra.mxu0 0.0
        %258 = vmatprep.subr.mxu0 0.0
        %259 = vmatpush1.xpose.msra.mxu0 0.0
        %260 = vmatprep.subr.mxu0 0.0
        %261 = vmatpush1.xpose.msra.mxu0 0.0
        %262 = vmatprep.subr.mxu0 0.0
        %263 = vmatpush1.xpose.msra.mxu0 0.0
        %264 = vmatprep.subr.mxu0 0.0
        %265 = vmatpush1.xpose.msra.mxu0 0.0
        %266 = vmatprep.subr.mxu0 0.0
        %267 = vmatpush1.xpose.msra.mxu0 0.0
        %268 = vmatprep.subr.mxu0 0.0
        %269 = vmatpush1.xpose.msra.mxu0 0.0
        %270 = vmatprep.subr.mxu0 0.0
        %271 = vmatpush1.xpose.msra.mxu0 0.0
        %272 = vmatprep.subr.mxu0 0.0
        %273 = vmatpush1.xpose.msra.mxu0 0.0
        %274 = vmatprep.subr.mxu0 0.0
        %275 = vmatpush1.xpose.msra.mxu0 0.0
        %276 = vmatprep.subr.mxu0 0.0
        %277 = vmatpush1.xpose.msra.mxu0 0.0
        %278 = vmatprep.subr.mxu0 0.0
        %279 = vmatpush1.xpose.msra.mxu0 0.0
        %280 = vmatprep.subr.mxu0 0.0
        %281 = vmatpush1.xpose.msra.mxu0 0.0
        %282 = vmatprep.subr.mxu0 0.0
        %283 = vmatpush1.xpose.msra.mxu0 0.0
        %284 = vmatprep.subr.mxu0 0.0
        %285 = vmatpush1.xpose.msra.mxu0 0.0
        %286 = vmatprep.subr.mxu0 0.0
        %287 = vmatpush1.xpose.msra.mxu0 0.0
        %288 = vmatprep.subr.mxu0 0.0
        %289 = vmatpush1.xpose.msra.mxu0 0.0
        %290 = vmatprep.subr.mxu0 0.0
        %291 = vmatpush1.xpose.msra.mxu0 0.0
        %292 = vmatprep.subr.mxu0 0.0
        %293 = vmatpush1.xpose.msra.mxu0 0.0
        %294 = vmatprep.subr.mxu0 0.0
        %295 = vmatpush1.xpose.msra.mxu0 0.0
        %296 = vmatprep.subr.mxu0 0.0
        %297 = vmatpush1.xpose.msra.mxu0 0.0
        %298 = vmatprep.subr.mxu0 0.0
        %299 = vmatpush1.xpose.msra.mxu0 0.0
        %300 = vmatprep.subr.mxu0 0.0
        %301 = vmatpush1.xpose.msra.mxu0 0.0
        %302 = vmatprep.subr.mxu0 0.0
        %303 = vmatpush1.xpose.msra.mxu0 0.0
        %304 = vmatprep.subr.mxu0 0.0
        %305 = vmatpush1.xpose.msra.mxu0 0.0
        %306 = vmatprep.subr.mxu0 0.0
        %307 = vmatpush1.xpose.msra.mxu0 0.0
        %308 = vmatprep.subr.mxu0 0.0
        %309 = vmatpush1.xpose.msra.mxu0 0.0
        %310 = vmatprep.subr.mxu0 0.0
        %311 = vmatpush1.xpose.msra.mxu0 0.0
        %312 = vmatprep.subr.mxu0 0.0
        %313 = vmatpush1.xpose.msra.mxu0 0.0
        %314 = vmatprep.subr.mxu0 0.0
        %315 = vmatpush1.xpose.msra.mxu0 0.0
        %316 = vmatprep.mubr.f32.mxu0 0.0
        %317 = vmatmul.mubr.f32.gmra.mrb[0].mxu0 %v224
        %v318 = vpop.f32.mrb[0].mxu0
        %v319 = vadd.f32 %v235, %v318
        %v320 = vpop.f32.mrb[0].mxu0
        %321 = vmatprep.mubr.f32.mxu0 0.0
        %322 = vmatmul.mubr.f32.gmra.mrb[0].mxu0 %v225
        %v323 = vpop.f32.mrb[0].mxu0
        %v324 = vadd.f32 %v240, %v323
        %v325 = vpop.f32.mrb[0].mxu0
        %326 = vmatprep.mubr.f32.mxu0 0.0
        %327 = vmatmul.mubr.f32.gmra.mrb[0].mxu0 %v226
        %v328 = vpop.f32.mrb[0].mxu0
        %v329 = vadd.f32 %v245, %v328
        %v330 = vpop.f32.mrb[0].mxu0
        %331 = vmatprep.mubr.f32.mxu0 0.0
        %332 = vmatmul.mubr.f32.gmra.mrb[0].mxu0 %v227
        %v333 = vpop.f32.mrb[0].mxu0
        %v334 = vadd.f32 %v250, %v333
        %v335 = vpop.f32.mrb[0].mxu0
        %336 = vdwg.mxu0
        %vm337 = vcmask 130048
        %338 = vst.msk [vmem:[%s221] sm:$0xff] %vm337, %v319
        %339 = vst.msk [vmem:[%s221 + $0x8] sm:$0xff] %vm337, %v324
        %340 = vst.msk [vmem:[%s221 + $0x10] sm:$0xff] %vm337, %v329
        %341 = vst.msk [vmem:[%s221 + $0x18] sm:$0xff] %vm337, %v334
        %p342 = scmp.lt.s32.totalorder %s19, 1
        %s343 = scalar_select %p342, %s19, 1
        %p344 = scmp.lt.s32.totalorder %s20, 0
        %s345 = scalar_select %p344, %s20, 0
        %s346 = smul.addr %s343, 4
        %s347 = sadd.s32 %s345, %s346
        %s348 = smul.addr %s347, 8
        %s349 = scalar_lea.vmem %s3, %s348
        // Predicated region
        $region37: #{tpu_custom_call.1} parent=31 // pred_check
          %p350 = pneg %p117
        $region38: #{tpu_custom_call.1} parent=31 // pred_check_branch
          %352 = sbr.rel (%p350) target = $region40
        $region39: #{tpu_custom_call.1} parent=31 // pred_region
          _
        $region40: #{tpu_custom_call.1} parent=31 // pred_fallthru
          _
      $region32: #{tpu_custom_call.1} parent=5 // pred_fallthru
        _
      %p353 = scmp.le.s32.totalorder 2, %s10
      // Predicated region
      $region41: #{tpu_custom_call.1} parent=5 // pred_check
        %p354 = pneg %p353
      $region42: #{tpu_custom_call.1} parent=5 // pred_check_branch
        %356 = sbr.rel (%p354) target = $region44
      $region43: #{tpu_custom_call.1} parent=5 // pred_region
        %s357 = ssub.s32 %s10, 2
        // Predicated region
        $region45: #{tpu_custom_call.1} parent=43 // pred_check
          %p358 = pneg %p123
        $region46: #{tpu_custom_call.1} parent=43 // pred_check_branch
          %360 = sbr.rel (%p358) target = $region48
        $region47: #{tpu_custom_call.1} parent=43 // pred_region
          %p361 = scmp.lt.s32.totalorder %s21, 1
          %s362 = scalar_select %p361, %s21, 1
          %p363 = scmp.lt.s32.totalorder %s22, 0
          %s364 = scalar_select %p363, %s22, 0
          %s365 = smul.addr %s362, 4
          %s366 = sadd.s32 %s364, %s365
          %s367 = smul.addr %s366, 8
          %s368 = scalar_lea.vmem %s3, %s367
        $region48: #{tpu_custom_call.1} parent=43 // pred_fallthru
          _
      $region44: #{tpu_custom_call.1} parent=5 // pred_fallthru
        _
    $region6: #{tpu_custom_call.1} parent=1 // loop_footer
      %s14 = sadd.s32 1, %s10
    $region7: #{tpu_custom_call.1} parent=1 // loop_footer_branch
      %9 = sbr.rel target = $region3
    $region8: #{tpu_custom_call.1} parent=1 // loop_exit
      _
    %369 = vsyncpa [#allocation3], 1
    %s370 = scalar_lea.sflag [#allocation3], 1
    %371 = vsyncpa %s370, 1

</llo_original>
